<compile_context>
chip_gen: v6e
topology: v6e:2x2x1
jax: 0.10.0
libtpu: 0.0.40
codegen_flags: <defaults>
</compile_context>

<pallas_src>
import math

import jax
import jax.numpy as jnp
from jax import lax
from jax.experimental import pallas as pl
from jax.experimental.pallas import tpu as pltpu


LANE = 128
_DEFAULT_VMEM_BUDGET = 12 * 1024 * 1024   # headroom under v5e's 16 MiB scoped default


def _round_up(x, m):
    return ((x + m - 1) // m) * m


def _sublane_align(dtype):
    # Minimum sublane tile: 8 for 4-byte, 16 for 2-byte, 32 for 1-byte dtypes.
    itemsize = jnp.dtype(dtype).itemsize
    return 8 * max(1, 4 // itemsize)


def _largest_divisor_tile(padded, cap, align):
    """Largest multiple of `align` that divides `padded` and is <= cap."""
    best = align
    t = align
    while t <= min(cap, padded):
        if padded % t == 0:
            best = t
        t += align
    return best


def _pad2(a, rows, cols):
    pr, pc = rows - a.shape[0], cols - a.shape[1]
    if pr == 0 and pc == 0:
        return a
    return jnp.pad(a, ((0, pr), (0, pc)))


# --------------------------------- kernels ----------------------------------

def _linear_kernel_2d(x_ref, w_ref, b_ref, o_ref):
    """Whole reduction dim in one tile: o = x @ w + b (no scratch, no pl.when)."""
    o_ref[...] = (
        lax.dot_general(x_ref[...], w_ref[...],
                        dimension_numbers=(((1,), (0,)), ((), ())),
                        preferred_element_type=jnp.float32)
        + b_ref[...]
    ).astype(o_ref.dtype)


def _linear_kernel_3d_f32(x_ref, w_ref, b_ref, o_ref):
    """K-tiled; f32 output block is grid-resident along k -> accumulate in place."""
    k = pl.program_id(2)

    @pl.when(k == 0)
    def _():
        o_ref[...] = jnp.zeros_like(o_ref)

    o_ref[...] += lax.dot_general(
        x_ref[...], w_ref[...],
        dimension_numbers=(((1,), (0,)), ((), ())),
        preferred_element_type=jnp.float32)

    @pl.when(k == pl.num_programs(2) - 1)
    def _():
        o_ref[...] += b_ref[...]


def _linear_kernel_3d_acc(x_ref, w_ref, b_ref, o_ref, acc_ref):
    """K-tiled; f32 VMEM accumulator with bias + cast epilogue (non-f32 outputs)."""
    k = pl.program_id(2)

    @pl.when(k == 0)
    def _():
        acc_ref[...] = jnp.zeros_like(acc_ref)

    acc_ref[...] += lax.dot_general(
        x_ref[...], w_ref[...],
        dimension_numbers=(((1,), (0,)), ((), ())),
        preferred_element_type=jnp.float32)

    @pl.when(k == pl.num_programs(2) - 1)
    def _():
        o_ref[...] = (acc_ref[...] + b_ref[...]).astype(o_ref.dtype)


# ------------------------- prepare (once per reset_noise) -------------------

def prepare_noisy_linear(weight_mu, weight_sigma, weight_epsilon,
                         bias_mu, bias_sigma, bias_epsilon, *, training=True):
    """Combine + pad the noisy parameters ONCE (per reset_noise()/mode switch).

    Returns (w_padded [Kp, Np], b_padded [1, Np], out_features) ready for
    linear_apply().  Doing this outside the per-step forward removes 2/3 of
    the weight HBM traffic and all per-call weight padding.
    """
    out_f, in_f = weight_mu.shape
    if training:
        w = weight_mu + weight_sigma * weight_epsilon
        b = bias_mu + bias_sigma * bias_epsilon
    else:
        w = weight_mu
        b = bias_mu
    Kp = _round_up(in_f, LANE)
    Np = _round_up(out_f, LANE)
    w_padded = _pad2(w.T, Kp, Np)                 # [in, out] — MXU-friendly
    b_padded = _pad2(b.reshape(1, out_f), 1, Np)
    return w_padded, b_padded, out_f


# ------------------------------ per-step forward -----------------------------

def linear_apply(x, w_padded, b_padded, out_features, *,
                 max_tm=512, tn_pref=256,
                 vmem_budget_bytes=_DEFAULT_VMEM_BUDGET):
    """y = x @ w + b with w pre-combined and padded to [Kp, Np]."""
    batch, in_f = x.shape
    Kp, Np = w_padded.shape
    assert in_f <= Kp and out_features <= Np
    dtype = x.dtype
    itemsize = jnp.dtype(dtype).itemsize
    is_f32 = jnp.dtype(dtype) == jnp.dtype(jnp.float32)

    # ---- batch tile: collapse the batch grid to 1 whenever possible ----
    sub = _sublane_align(dtype)
    Bp = _round_up(batch, sub)
    if Bp <= max_tm:
        TM = Bp
    else:
        TM = max_tm                      # 512: multiple of 8/16/32
        Bp = _round_up(Bp, TM)

    # ---- N tile: largest lane-dense divisor of Np (minimises pad waste) ----
    TN = _largest_divisor_tile(Np, tn_pref, LANE)
    # v7x has 2 TensorCores: ensure the parallel grid axes have >= 2 steps.
    if (Bp // TM) * (Np // TN) == 1 and Np >= 2 * LANE:
        TN = LANE

    def budget(tm, tn, tk, with_acc):
        bts = 2 * (tm * tk + tk * tn + tn) * itemsize   # double-buffered inputs
        bts += 2 * tm * tn * itemsize                   # double-buffered output
        if with_acc:
            bts += tm * tn * 4
        return bts

    # ---- K tile: prefer collapsing the reduction axis to a single grid step ----
    single_k = budget(TM, TN, Kp, with_acc=False) <= vmem_budget_bytes
    if not single_k:
        with_acc = not is_f32
        TK = Kp
        while TK > LANE and budget(TM, TN, TK, with_acc) > vmem_budget_bytes:
            TK = _largest_divisor_tile(Kp, TK - LANE, LANE)
        while TN > LANE and budget(TM, TN, TK, with_acc) > vmem_budget_bytes:
            TN = _largest_divisor_tile(Np, TN - LANE, LANE)
        # TODO(synk): also shrink TM if even (TM, 128, 128) overflows the budget.

    xp = _pad2(x, Bp, Kp)                # cheap vs weights; no-op when aligned
    out_shape = jax.ShapeDtypeStruct((Bp, Np), dtype)

    if single_k:
        grid = (Bp // TM, Np // TN)
        yp = pl.pallas_call(
            _linear_kernel_2d,
            out_shape=out_shape,
            grid=grid,
            in_specs=[pl.BlockSpec((TM, Kp), lambda i, j: (i, 0)),
                      pl.BlockSpec((Kp, TN), lambda i, j: (0, j)),
                      pl.BlockSpec((1, TN), lambda i, j: (0, j))],
            out_specs=pl.BlockSpec((TM, TN), lambda i, j: (i, j)),
            compiler_params=pltpu.CompilerParams(
                dimension_semantics=("parallel", "parallel")),
        )(xp, w_padded, b_padded)
    else:
        grid = (Bp // TM, Np // TN, Kp // TK)
        in_specs = [pl.BlockSpec((TM, TK), lambda i, j, k: (i, k)),
                    pl.BlockSpec((TK, TN), lambda i, j, k: (k, j)),
                    pl.BlockSpec((1, TN), lambda i, j, k: (0, j))]
        out_specs = pl.BlockSpec((TM, TN), lambda i, j, k: (i, j))
        cparams = pltpu.CompilerParams(
            dimension_semantics=("parallel", "parallel", "arbitrary"))
        if is_f32:
            yp = pl.pallas_call(
                _linear_kernel_3d_f32,
                out_shape=out_shape, grid=grid,
                in_specs=in_specs, out_specs=out_specs,
                compiler_params=cparams,
            )(xp, w_padded, b_padded)
        else:
            yp = pl.pallas_call(
                _linear_kernel_3d_acc,
                out_shape=out_shape, grid=grid,
                in_specs=in_specs, out_specs=out_specs,
                scratch_shapes=[pltpu.VMEM((TM, TN), jnp.float32)],
                compiler_params=cparams,
            )(xp, w_padded, b_padded)

    if Bp == batch and Np == out_features:
        return yp
    return yp[:batch, :out_features]


def noisy_linear(x, weight_mu, weight_sigma, weight_epsilon,
                 bias_mu, bias_sigma, bias_epsilon, *, training=True, **kwargs):
    """Drop-in forward matching NoisyLinear.forward semantics.

    For SEARL the epsilons only change at reset_noise(); for best performance
    call prepare_noisy_linear() there and reuse its output with linear_apply()
    for every forward (this convenience wrapper re-combines per call).
    """
    w, b, out_f = prepare_noisy_linear(
        weight_mu, weight_sigma, weight_epsilon,
        bias_mu, bias_sigma, bias_epsilon, training=training)
    return linear_apply(x, w, b, out_f, **kwargs)


# ---------------- deterministic parameter / noise construction ----------------

def _scale_noise(key, size):
    # x = randn(size); x = sign(x) * sqrt(|x|)
    x = jax.random.normal(key, (size,), dtype=jnp.float32)
    return jnp.sign(x) * jnp.sqrt(jnp.abs(x))


def init_noisy_linear(key, in_features, out_features, std_init=0.4):
    k_wmu, k_bmu, k_ein, k_eout = jax.random.split(key, 4)
    mu_range = 1.0 / math.sqrt(in_features)

    weight_mu = jax.random.uniform(
        k_wmu, (out_features, in_features), jnp.float32, -mu_range, mu_range)
    weight_sigma = jnp.full((out_features, in_features),
                            std_init / math.sqrt(in_features), jnp.float32)
    bias_mu = jax.random.uniform(
        k_bmu, (out_features,), jnp.float32, -mu_range, mu_range)
    bias_sigma = jnp.full((out_features,),
                          std_init / math.sqrt(out_features), jnp.float32)

    eps_in = _scale_noise(k_ein, in_features)
    eps_out = _scale_noise(k_eout, out_features)
    weight_epsilon = jnp.outer(eps_out, eps_in)     # epsilon_out.ger(epsilon_in)
    bias_epsilon = eps_out

    return dict(weight_mu=weight_mu, weight_sigma=weight_sigma,
                weight_epsilon=weight_epsilon, bias_mu=bias_mu,
                bias_sigma=bias_sigma, bias_epsilon=bias_epsilon)


if __name__ == "__main__":
    key = jax.random.PRNGKey(0)
    k_params, k_x, k_x2 = jax.random.split(key, 3)

    batch, in_features, out_features = 8, 32, 64
    params = init_noisy_linear(k_params, in_features, out_features)
    x = jax.random.normal(k_x, (batch, in_features), dtype=jnp.float32)

    # --- training mode: combine noise once (per reset_noise), then apply ---
    w_tr, b_tr, of = prepare_noisy_linear(**params, training=True)
    y = linear_apply(x, w_tr, b_tr, of)
    jax.block_until_ready(y)

    w_ref = params["weight_mu"] + params["weight_sigma"] * params["weight_epsilon"]
    b_ref = params["bias_mu"] + params["bias_sigma"] * params["bias_epsilon"]
    y_ref = x @ w_ref.T + b_ref
    assert jnp.allclose(y, y_ref, atol=1e-5, rtol=1e-5), "train-mode mismatch"

    # --- drop-in forward (original signature), eval mode ---
    y_eval = noisy_linear(
        x,
        params["weight_mu"], params["weight_sigma"], params["weight_epsilon"],
        params["bias_mu"], params["bias_sigma"], params["bias_epsilon"],
        training=False,
    )
    jax.block_until_ready(y_eval)
    y_eval_ref = x @ params["weight_mu"].T + params["bias_mu"]
    assert jnp.allclose(y_eval, y_eval_ref, atol=1e-5, rtol=1e-5), "eval-mode mismatch"

    # --- ragged shapes + tiny VMEM budget to exercise the 3-D (K-tiled) path ---
    b2, in2, out2 = 5, 300, 200
    params2 = init_noisy_linear(jax.random.PRNGKey(1), in2, out2)
    x2 = jax.random.normal(k_x2, (b2, in2), dtype=jnp.float32)
    w2, bb2, of2 = prepare_noisy_linear(**params2, training=True)
    y2 = linear_apply(x2, w2, bb2, of2, vmem_budget_bytes=256 * 1024)
    jax.block_until_ready(y2)
    w2_ref = params2["weight_mu"] + params2["weight_sigma"] * params2["weight_epsilon"]
    b2_ref = params2["bias_mu"] + params2["bias_sigma"] * params2["bias_epsilon"]
    y2_ref = x2 @ w2_ref.T + b2_ref
    assert jnp.allclose(y2, y2_ref, atol=1e-4, rtol=1e-4), "tiled-K mismatch"

    print("KERNEL_OK")
</pallas_src>

<mosaic_0001>
module attributes {stable_mosaic.version = 11 : i64} {
  func.func @_linear_kernel_2d(%arg0: i32, %arg1: i32, %arg2: memref<8x128xf32, #tpu.memory_space<vmem>>, %arg3: memref<128x128xf32, #tpu.memory_space<vmem>>, %arg4: memref<1x128xf32, #tpu.memory_space<vmem>>, %arg5: memref<8x128xf32, #tpu.memory_space<vmem>>) attributes {dimension_semantics = [#tpu.dimension_semantics<parallel>, #tpu.dimension_semantics<parallel>], iteration_bounds = array<i64: 1, 1>, scalar_prefetch = 0 : i64, scratch_operands = 0 : i64, tpu.core_type = #tpu.core_type<tc>, window_params = [{transform_indices = @transform_0, window_bounds = array<i64: 8, 128>}, {transform_indices = @transform_1, window_bounds = array<i64: 128, 128>}, {transform_indices = @transform_2, window_bounds = array<i64: 1, 128>}, {transform_indices = @transform_3, window_bounds = array<i64: 8, 128>}]} {
    %c0 = arith.constant 0 : index
    %c0_0 = arith.constant 0 : index
    %0 = vector.load %arg2[%c0, %c0_0] : memref<8x128xf32, #tpu.memory_space<vmem>>, vector<8x128xf32>
    %c0_1 = arith.constant 0 : index
    %c0_2 = arith.constant 0 : index
    %1 = vector.load %arg3[%c0_1, %c0_2] : memref<128x128xf32, #tpu.memory_space<vmem>>, vector<128x128xf32>
    %cst = arith.constant dense<0.000000e+00> : vector<8x128xf32>
    %2 = tpu.matmul %0, %1, %cst {dimension_numbers = #tpu.dot_dimension_numbers<[1], [0], [0], [1], [0, 0, 1, 1], [], []>} : vector<8x128xf32>, vector<128x128xf32>, vector<8x128xf32> -> vector<8x128xf32>
    %c0_3 = arith.constant 0 : index
    %c0_4 = arith.constant 0 : index
    %3 = vector.load %arg4[%c0_3, %c0_4] : memref<1x128xf32, #tpu.memory_space<vmem>>, vector<1x128xf32>
    %4 = vector.broadcast %3 : vector<1x128xf32> to vector<8x128xf32>
    %5 = arith.addf %2, %4 : vector<8x128xf32>
    %c0_5 = arith.constant 0 : index
    %c0_6 = arith.constant 0 : index
    %6 = vector.load %arg5[%c0_5, %c0_6] : memref<8x128xf32, #tpu.memory_space<vmem>>, vector<8x128xf32>
    tpu.vector_store %arg5[%c0_5, %c0_6], %5 {strides = array<i32>} : memref<8x128xf32, #tpu.memory_space<vmem>>, vector<8x128xf32>,
    return
  }
  func.func @transform_0(%arg0: i32, %arg1: i32) -> (i32, i32) {
    %c0_i32 = arith.constant 0 : i32
    %c0_i32_0 = arith.constant 0 : i32
    return %arg0, %c0_i32 : i32, i32
  }
  func.func @transform_1(%arg0: i32, %arg1: i32) -> (i32, i32) {
    %c0_i32 = arith.constant 0 : i32
    %c0_i32_0 = arith.constant 0 : i32
    return %c0_i32, %arg1 : i32, i32
  }
  func.func @transform_2(%arg0: i32, %arg1: i32) -> (i32, i32) {
    %c0_i32 = arith.constant 0 : i32
    %c0_i32_0 = arith.constant 0 : i32
    return %c0_i32, %arg1 : i32, i32
  }
  func.func @transform_3(%arg0: i32, %arg1: i32) -> (i32, i32) {
    %c0_i32 = arith.constant 0 : i32
    return %arg0, %arg1 : i32, i32
  }
}

</mosaic_0001>

<llo_original>
// kernel: tpu_custom_call.1
$region0: #{tpu_custom_call.1}
  #allocation0 [shape = 'u32[]', space=smem, size = 0x4, offset = 0x4, fixed_abs, tag = 'smem constant byte address 0x4 - core index']
  #allocation1 [shape = 'u32[144,128]{1,0:T(1,128)}', space=vmem, size = 0x12000, scoped, tag = 'internal scratch']
  %s0 = inlined_call_operand.hbm [shape: f32[8,128], index: 0, kind: input, shape index: {}]
  %s1 = inlined_call_operand.hbm [shape: f32[128,128], index: 1, kind: input, shape index: {}]
  %s2 = inlined_call_operand.vmem [shape: f32[1,128], index: 2, kind: input, shape index: {}]
  %s3 = inlined_call_operand.hbm [shape: f32[8,128], index: 3, kind: output, shape index: {}]
  %s4 = sld [smem:[#allocation0]]
  $region30: #{tpu_custom_call.1} parent=0
    _
  %s6 = ssub.s32 1, %s4
  %s7 = scalar_select 0, %s6, %s4
  $region1: #{tpu_custom_call.1} parent=0
    #allocation2 [shape = 'u8[4096]{0}', space=vmem, size = 0x1000, scoped, tag = 'input window, operand 0, single buffered']
    #allocation3 [shape = 's32[1]{0}', space=sflag, size = 0x4, scoped, tag = 'scoped memory for tpu_custom_call.1']
    #allocation4 [shape = 's32[1]{0}', space=sflag, size = 0x4, scoped, tag = 'scoped memory for tpu_custom_call.1']
    #allocation5 [shape = 'u8[65536]{0}', space=vmem, size = 0x10000, scoped, tag = 'input window, operand 1, single buffered']
    #allocation6 [shape = 's32[1]{0}', space=sflag, size = 0x4, scoped, tag = 'scoped memory for tpu_custom_call.1']
    #allocation7 [shape = 'u8[4096]{0}', space=vmem, size = 0x1000, scoped, tag = 'output window, operand 0, single buffered']
    %8 = vsyncpa [#allocation3], 0
    %9 = vsyncpa [#allocation6], 0
    %10 = vsyncpa [#allocation4], 0
    // Predicated region
    $region2: #{tpu_custom_call.1} parent=1 // pred_check
      _
    $region3: #{tpu_custom_call.1} parent=1 // pred_check_branch
      %12 = sbr.rel (0) target = $region5
    $region4: #{tpu_custom_call.1} parent=1 // pred_region
      %s14 = ssub.s32 128, 128
      %15 = vsyncadd [#allocation3], %s14
      %s17 = sshll.u32 [#allocation2], 4
      %s18 = int_to_ptr.vmem [resolvable:$true] %s17
      %20 = dma.hbm_to_vmem [thread:$0]  %s0, 128, %s18, [#allocation3]
    $region5: #{tpu_custom_call.1} parent=1 // pred_fallthru
      _
    // Predicated region
    $region6: #{tpu_custom_call.1} parent=1 // pred_check
      _
    $region7: #{tpu_custom_call.1} parent=1 // pred_check_branch
      %22 = sbr.rel (0) target = $region9
    $region8: #{tpu_custom_call.1} parent=1 // pred_region
      %s24 = ssub.s32 2048, 2048
      %25 = vsyncadd [#allocation6], %s24
      %s26 = sshll.u32 [#allocation5], 4
      %s27 = int_to_ptr.vmem [resolvable:$true] %s26
      %32 = dma.hbm_to_vmem [thread:$0]  %s1, 2048, %s27, [#allocation6], 128, 128, 8
    $region9: #{tpu_custom_call.1} parent=1 // pred_fallthru
      _
    // Predicated region
    $region10: #{tpu_custom_call.1} parent=1 // pred_check
      _
    $region11: #{tpu_custom_call.1} parent=1 // pred_check_branch
      %34 = sbr.rel (0) target = $region13
    $region12: #{tpu_custom_call.1} parent=1 // pred_region
      _
    $region13: #{tpu_custom_call.1} parent=1 // pred_fallthru
      _
    // Predicated region
    $region14: #{tpu_custom_call.1} parent=1 // pred_check
      _
    $region15: #{tpu_custom_call.1} parent=1 // pred_check_branch
      %36 = sbr.rel (0) target = $region17
    $region16: #{tpu_custom_call.1} parent=1 // pred_region
      %37 = dma.done [#allocation3], 128
    $region17: #{tpu_custom_call.1} parent=1 // pred_fallthru
      _
    // Predicated region
    $region18: #{tpu_custom_call.1} parent=1 // pred_check
      _
    $region19: #{tpu_custom_call.1} parent=1 // pred_check_branch
      %39 = sbr.rel (0) target = $region21
    $region20: #{tpu_custom_call.1} parent=1 // pred_region
      %40 = dma.done [#allocation6], 2048
    $region21: #{tpu_custom_call.1} parent=1 // pred_fallthru
      _
    %v41 = vld [vmem:[#allocation2] sm:$0xff]
    %v42 = vld [vmem:[#allocation5] sm:$0xff]
    %v43 = vld [vmem:[#allocation5 + $0x8] sm:$0xff]
    %v44 = vld [vmem:[#allocation5 + $0x10] sm:$0xff]
    %v45 = vld [vmem:[#allocation5 + $0x18] sm:$0xff]
    %v46 = vld [vmem:[#allocation5 + $0x20] sm:$0xff]
    %v47 = vld [vmem:[#allocation5 + $0x28] sm:$0xff]
    %v48 = vld [vmem:[#allocation5 + $0x30] sm:$0xff]
    %v49 = vld [vmem:[#allocation5 + $0x38] sm:$0xff]
    %v50 = vld [vmem:[#allocation5 + $0x40] sm:$0xff]
    %v51 = vld [vmem:[#allocation5 + $0x48] sm:$0xff]
    %v52 = vld [vmem:[#allocation5 + $0x50] sm:$0xff]
    %v53 = vld [vmem:[#allocation5 + $0x58] sm:$0xff]
    %v54 = vld [vmem:[#allocation5 + $0x60] sm:$0xff]
    %v55 = vld [vmem:[#allocation5 + $0x68] sm:$0xff]
    %v56 = vld [vmem:[#allocation5 + $0x70] sm:$0xff]
    %v57 = vld [vmem:[#allocation5 + $0x78] sm:$0xff]
    %v58 = vld [vmem:[%s2] sm:$0x1]
    %v60 = vlaneseq
    %v61 = vshrl.u32 %v60, 7
    %v62 = vsub.s32 0, %v61
    %v63 = vrot.slane %v58, %v62
    %65 = vmatprep.subr.mxu0 0.0
    %66 = vmatpush1.msra.mxu0 %v57
    %67 = vmatprep.subr.mxu0 0.0
    %68 = vmatpush1.msra.mxu0 %v56
    %69 = vmatprep.subr.mxu0 0.0
    %70 = vmatpush1.msra.mxu0 %v55
    %71 = vmatprep.subr.mxu0 0.0
    %72 = vmatpush1.msra.mxu0 %v54
    %73 = vmatprep.subr.mxu0 0.0
    %74 = vmatpush1.msra.mxu0 %v53
    %75 = vmatprep.subr.mxu0 0.0
    %76 = vmatpush1.msra.mxu0 %v52
    %77 = vmatprep.subr.mxu0 0.0
    %78 = vmatpush1.msra.mxu0 %v51
    %79 = vmatprep.subr.mxu0 0.0
    %80 = vmatpush1.msra.mxu0 %v50
    %81 = vmatprep.subr.mxu0 0.0
    %82 = vmatpush1.msra.mxu0 %v49
    %83 = vmatprep.subr.mxu0 0.0
    %84 = vmatpush1.msra.mxu0 %v48
    %85 = vmatprep.subr.mxu0 0.0
    %86 = vmatpush1.msra.mxu0 %v47
    %87 = vmatprep.subr.mxu0 0.0
    %88 = vmatpush1.msra.mxu0 %v46
    %89 = vmatprep.subr.mxu0 0.0
    %90 = vmatpush1.msra.mxu0 %v45
    %91 = vmatprep.subr.mxu0 0.0
    %92 = vmatpush1.msra.mxu0 %v44
    %93 = vmatprep.subr.mxu0 0.0
    %94 = vmatpush1.msra.mxu0 %v43
    %95 = vmatprep.subr.mxu0 0.0
    %96 = vmatpush1.msra.mxu0 %v42
    %97 = vmatprep.subr.mxu0 0.0
    %98 = vmatpush2.msra.mxu0 0.0
    %99 = vmatprep.subr.mxu0 0.0
    %100 = vmatpush2.msra.mxu0 0.0
    %101 = vmatprep.subr.mxu0 0.0
    %102 = vmatpush2.msra.mxu0 0.0
    %103 = vmatprep.subr.mxu0 0.0
    %104 = vmatpush2.msra.mxu0 0.0
    %105 = vmatprep.subr.mxu0 0.0
    %106 = vmatpush2.msra.mxu0 0.0
    %107 = vmatprep.subr.mxu0 0.0
    %108 = vmatpush2.msra.mxu0 0.0
    %109 = vmatprep.subr.mxu0 0.0
    %110 = vmatpush2.msra.mxu0 0.0
    %111 = vmatprep.subr.mxu0 0.0
    %112 = vmatpush2.msra.mxu0 0.0
    %113 = vmatprep.subr.mxu0 0.0
    %114 = vmatpush2.msra.mxu0 0.0
    %115 = vmatprep.subr.mxu0 0.0
    %116 = vmatpush2.msra.mxu0 0.0
    %117 = vmatprep.subr.mxu0 0.0
    %118 = vmatpush2.msra.mxu0 0.0
    %119 = vmatprep.subr.mxu0 0.0
    %120 = vmatpush2.msra.mxu0 0.0
    %121 = vmatprep.subr.mxu0 0.0
    %122 = vmatpush2.msra.mxu0 0.0
    %123 = vmatprep.subr.mxu0 0.0
    %124 = vmatpush2.msra.mxu0 0.0
    %125 = vmatprep.subr.mxu0 0.0
    %126 = vmatpush2.msra.mxu0 0.0
    %127 = vmatprep.subr.mxu0 0.0
    %128 = vmatpush2.msra.mxu0 0.0
    %129 = vmatprep.mubr.f32.mxu0 0.0
    %130 = vmatmul.mubr.f32.gmra.mxu0 %v41
    %v131 = vpop.f32.mrf.mxu0
    %v132 = vadd.f32 %v63, %v131
    %v133 = vpop.f32.mrf.mxu0
    %134 = vdwg.mxu0
    %135 = vst [vmem:[#allocation7] sm:$0xff] %v132
    // Predicated region
    $region22: #{tpu_custom_call.1} parent=1 // pred_check
      _
    $region23: #{tpu_custom_call.1} parent=1 // pred_check_branch
      %137 = sbr.rel (0) target = $region25
    $region24: #{tpu_custom_call.1} parent=1 // pred_region
      %s139 = ssub.s32 128, 128
      %140 = vsyncadd [#allocation4], %s139
      %s142 = sshll.u32 [#allocation7], 4
      %s143 = int_to_ptr.vmem [resolvable:$true] %s142
      %145 = dma.vmem_to_hbm [thread:$0]  %s143, 128, %s3, [#allocation4]
    $region25: #{tpu_custom_call.1} parent=1 // pred_fallthru
      _
    // Predicated region
    $region26: #{tpu_custom_call.1} parent=1 // pred_check
      _
    $region27: #{tpu_custom_call.1} parent=1 // pred_check_branch
      %147 = sbr.rel (0) target = $region29
    $region28: #{tpu_custom_call.1} parent=1 // pred_region
      %148 = dma.done [#allocation4], 128
    $region29: #{tpu_custom_call.1} parent=1 // pred_fallthru
      _
    %149 = vsyncpa [#allocation3], 1
    %150 = vsyncpa [#allocation6], 1
    %151 = vsyncpa [#allocation4], 1

</llo_original>
